<compile_context>
chip_gen: v5e
topology: v5e:2x2
jax: 0.10.0
libtpu: 0.0.40
codegen_flags: <defaults>
</compile_context>

<pallas_src>
import jax
import jax.numpy as jnp
from jax import lax
from jax.experimental import pallas as pl
from jax.experimental.pallas import tpu as pltpu

HIDDEN1 = 64
HIDDEN2 = 32
LANE = 128  # hidden1 padded to a full lane width (zero cols -> exact result)


# ----------------------------------------------------------------------------
# Fused FC kernel: relu(relu(x @ W1 + b1) @ W2 + b2)
# Grid: (batch_tiles, k_tiles) -- K (input_size) is the reduction axis (last).
# ----------------------------------------------------------------------------
def _fc_kernel(x_ref, w1_ref, b1_ref, w2_ref, b2_ref, o_ref, acc_ref):
    # x:   (TB, TK)      f32
    # w1:  (TK, 128)     f32, cols [64:128] zero-padded
    # b1:  (1, 128)      f32, entries [64:128] zero
    # w2:  (128, 32)     f32, rows [64:128] zero-padded
    # b2:  (1, 32)       f32
    # o:   (TB, 32)      f32
    # acc: (TB, 128)     f32 VMEM scratch (x @ W1 partial sums)
    k = pl.program_id(1)

    @pl.when(k == 0)
    def _():
        acc_ref[...] = jnp.zeros_like(acc_ref)

    acc_ref[...] += jnp.dot(
        x_ref[...], w1_ref[...],
        preferred_element_type=jnp.float32,
        precision=lax.Precision.HIGHEST)

    @pl.when(k == pl.num_programs(1) - 1)
    def _():
        h = jnp.maximum(acc_ref[...] + b1_ref[...], 0.0)   # padded cols stay 0
        y = jnp.dot(h, w2_ref[...],
                    preferred_element_type=jnp.float32,
                    precision=lax.Precision.HIGHEST) + b2_ref[...]
        o_ref[...] = jnp.maximum(y, 0.0).astype(o_ref.dtype)


# ----------------------------------------------------------------------------
# Parameter init (mirrors nn.Linear default init) and one-time prepare step
# ----------------------------------------------------------------------------
def init_params(key, input_size):
    k1, k2, k3, k4 = jax.random.split(key, 4)
    lim1 = 1.0 / jnp.sqrt(float(input_size))
    w1 = jax.random.uniform(k1, (input_size, HIDDEN1), jnp.float32, -lim1, lim1)
    b1 = jax.random.uniform(k2, (HIDDEN1,), jnp.float32, -lim1, lim1)
    lim2 = 1.0 / jnp.sqrt(float(HIDDEN1))
    w2 = jax.random.uniform(k3, (HIDDEN1, HIDDEN2), jnp.float32, -lim2, lim2)
    b2 = jax.random.uniform(k4, (HIDDEN2,), jnp.float32, -lim2, lim2)
    return (w1, b1), (w2, b2)


def prepare_params(params):
    """One-time repack: pad the 64-wide hidden dim to 128 lanes with zeros."""
    (w1, b1), (w2, b2) = params
    d = w1.shape[0]
    w1p = jnp.zeros((d, LANE), jnp.float32).at[:, :HIDDEN1].set(w1)
    b1p = jnp.zeros((1, LANE), jnp.float32).at[:, :HIDDEN1].set(b1)
    w2p = jnp.zeros((LANE, HIDDEN2), jnp.float32).at[:HIDDEN1, :].set(w2)
    b2p = b2.reshape(1, HIDDEN2).astype(jnp.float32)
    return w1p, b1p, w2p, b2p


# ----------------------------------------------------------------------------
# Forward: batch-tiled (and optionally K-tiled) fused pallas_call.
# ----------------------------------------------------------------------------
def fully_connected(x, prepared, *, tb=512, tk=512):
    w1p, b1p, w2p, b2p = prepared
    b, d = x.shape
    assert w1p.shape[0] == d, (w1p.shape, x.shape)

    x = x.astype(jnp.float32)

    # Batch tiling: pad rows to a multiple of 8 sublanes, tile at most `tb`.
    bp = ((b + 7) // 8) * 8
    tb_eff = tb if bp >= tb else bp
    bp = pl.cdiv(bp, tb_eff) * tb_eff
    if bp != b:
        x = jnp.zeros((bp, d), jnp.float32).at[:b, :].set(x)

    # K (input_size) tiling only when it divides cleanly; else one full block.
    tk_eff = tk if (d > tk and d % tk == 0) else d
    nb, nk = bp // tb_eff, d // tk_eff

    out = pl.pallas_call(
        _fc_kernel,
        out_shape=jax.ShapeDtypeStruct((bp, HIDDEN2), jnp.float32),
        grid_spec=pltpu.PrefetchScalarGridSpec(
            num_scalar_prefetch=0,
            grid=(nb, nk),
            in_specs=[
                pl.BlockSpec((tb_eff, tk_eff), lambda i, k: (i, k)),   # x
                pl.BlockSpec((tk_eff, LANE), lambda i, k: (k, 0)),     # W1 pad
                pl.BlockSpec((1, LANE), lambda i, k: (0, 0)),          # b1 pad
                pl.BlockSpec((LANE, HIDDEN2), lambda i, k: (0, 0)),    # W2 pad
                pl.BlockSpec((1, HIDDEN2), lambda i, k: (0, 0)),       # b2
            ],
            out_specs=pl.BlockSpec((tb_eff, HIDDEN2), lambda i, k: (i, 0)),
            scratch_shapes=[pltpu.VMEM((tb_eff, LANE), jnp.float32)],
        ),
        compiler_params=pltpu.CompilerParams(
            dimension_semantics=("parallel", "arbitrary")),
    )(x, w1p, b1p, w2p, b2p)
    return out[:b]


# ----------------------------------------------------------------------------
# Pure-JAX reference for correctness checking (HIGHEST so the ref itself is
# not the default 1-pass-bf16 TPU matmul).
# ----------------------------------------------------------------------------
def _ref(x, params):
    (w1, b1), (w2, b2) = params
    h = jnp.maximum(
        jnp.dot(x, w1, precision=lax.Precision.HIGHEST) + b1, 0.0)
    return jnp.maximum(
        jnp.dot(h, w2, precision=lax.Precision.HIGHEST) + b2, 0.0)


if __name__ == "__main__":
    INPUT_SIZE = 128
    BATCH = 4

    key = jax.random.PRNGKey(0)
    kx, kp, kx2, kp2 = jax.random.split(key, 4)

    fwd = jax.jit(fully_connected)

    # --- Small-shape check (matches the module's intended tiny workload) ----
    x = jax.random.normal(kx, (BATCH, INPUT_SIZE), jnp.float32)
    params = init_params(kp, INPUT_SIZE)
    prepared = prepare_params(params)          # one-time weight repack

    out = jax.block_until_ready(fwd(x, prepared))
    assert out.shape == (BATCH, HIDDEN2), out.shape
    assert out.dtype == jnp.float32, out.dtype
    assert bool(jnp.all(jnp.isfinite(out)))
    ref = _ref(x, params)
    assert bool(jnp.allclose(out, ref, atol=1e-5, rtol=1e-5)), \
        float(jnp.max(jnp.abs(out - ref)))

    # --- Larger check: exercises batch padding (600 -> 1024 rows), 2 batch
    #     tiles, and the K-reduction grid (input_size=1024 -> 2 K tiles). ----
    B2, D2 = 600, 1024
    x2 = jax.random.normal(kx2, (B2, D2), jnp.float32)
    params2 = init_params(kp2, D2)
    prepared2 = prepare_params(params2)

    out2 = jax.block_until_ready(fwd(x2, prepared2))
    assert out2.shape == (B2, HIDDEN2), out2.shape
    ref2 = _ref(x2, params2)
    assert bool(jnp.allclose(out2, ref2, atol=2e-5, rtol=1e-5)), \
        float(jnp.max(jnp.abs(out2 - ref2)))

    print("KERNEL_OK")
</pallas_src>

<mosaic_0001>
module attributes {stable_mosaic.version = 11 : i64} {
  func.func @_fc_kernel(%arg0: i32, %arg1: i32, %arg2: memref<8x128xf32, #tpu.memory_space<vmem>>, %arg3: memref<128x128xf32, #tpu.memory_space<vmem>>, %arg4: memref<1x128xf32, #tpu.memory_space<vmem>>, %arg5: memref<128x32xf32, #tpu.memory_space<vmem>>, %arg6: memref<1x32xf32, #tpu.memory_space<vmem>>, %arg7: memref<8x32xf32, #tpu.memory_space<vmem>>, %arg8: memref<8x128xf32, #tpu.memory_space<vmem>>) attributes {dimension_semantics = [#tpu.dimension_semantics<parallel>, #tpu.dimension_semantics<arbitrary>], iteration_bounds = array<i64: 1, 1>, scalar_prefetch = 0 : i64, scratch_operands = 1 : i64, tpu.core_type = #tpu.core_type<tc>, window_params = [{transform_indices = @transform_0, window_bounds = array<i64: 8, 128>}, {transform_indices = @transform_1, window_bounds = array<i64: 128, 128>}, {pipeline_mode = #tpu.pipeline_mode<synchronous>, transform_indices = @transform_2, window_bounds = array<i64: 1, 128>}, {pipeline_mode = #tpu.pipeline_mode<synchronous>, transform_indices = @transform_3, window_bounds = array<i64: 128, 32>}, {pipeline_mode = #tpu.pipeline_mode<synchronous>, transform_indices = @transform_4, window_bounds = array<i64: 1, 32>}, {transform_indices = @transform_5, window_bounds = array<i64: 8, 32>}]} {
    %c0_i32 = arith.constant 0 : i32
    %0 = arith.cmpi eq, %arg1, %c0_i32 : i32
    %1 = arith.extui %0 : i1 to i32
    %c0_i32_0 = arith.constant 0 : i32
    %2 = arith.cmpi ne, %1, %c0_i32_0 : i32
    scf.if %2 {
      %cst_10 = arith.constant 0.000000e+00 : f32
      %12 = vector.broadcast %cst_10 : f32 to vector<8x128xf32>
      %c0_11 = arith.constant 0 : index
      %c0_12 = arith.constant 0 : index
      %13 = vector.load %arg8[%c0_11, %c0_12] : memref<8x128xf32, #tpu.memory_space<vmem>>, vector<8x128xf32>
      tpu.vector_store %arg8[%c0_11, %c0_12], %12 {strides = array<i32>} : memref<8x128xf32, #tpu.memory_space<vmem>>, vector<8x128xf32>,
    } else {
    }
    %c0 = arith.constant 0 : index
    %c0_1 = arith.constant 0 : index
    %3 = vector.load %arg8[%c0, %c0_1] : memref<8x128xf32, #tpu.memory_space<vmem>>, vector<8x128xf32>
    %c0_2 = arith.constant 0 : index
    %c0_3 = arith.constant 0 : index
    %4 = vector.load %arg2[%c0_2, %c0_3] : memref<8x128xf32, #tpu.memory_space<vmem>>, vector<8x128xf32>
    %c0_4 = arith.constant 0 : index
    %c0_5 = arith.constant 0 : index
    %5 = vector.load %arg3[%c0_4, %c0_5] : memref<128x128xf32, #tpu.memory_space<vmem>>, vector<128x128xf32>
    %cst = arith.constant dense<0.000000e+00> : vector<8x128xf32>
    %6 = tpu.matmul %4, %5, %cst {dimension_numbers = #tpu.dot_dimension_numbers<[1], [0], [0], [1], [0, 0, 1, 1], [], []>, precision = #tpu.contract_precision<fp32>} : vector<8x128xf32>, vector<128x128xf32>, vector<8x128xf32> -> vector<8x128xf32>
    %7 = arith.addf %3, %6 : vector<8x128xf32>
    %c0_6 = arith.constant 0 : index
    %c0_7 = arith.constant 0 : index
    %8 = vector.load %arg8[%c0_6, %c0_7] : memref<8x128xf32, #tpu.memory_space<vmem>>, vector<8x128xf32>
    tpu.vector_store %arg8[%c0_6, %c0_7], %7 {strides = array<i32>} : memref<8x128xf32, #tpu.memory_space<vmem>>, vector<8x128xf32>,
    %c0_i32_8 = arith.constant 0 : i32
    %9 = arith.cmpi eq, %arg1, %c0_i32_8 : i32
    %10 = arith.extui %9 : i1 to i32
    %c0_i32_9 = arith.constant 0 : i32
    %11 = arith.cmpi ne, %10, %c0_i32_9 : i32
    scf.if %11 {
      %c0_10 = arith.constant 0 : index
      %c0_11 = arith.constant 0 : index
      %12 = vector.load %arg8[%c0_10, %c0_11] : memref<8x128xf32, #tpu.memory_space<vmem>>, vector<8x128xf32>
      %c0_12 = arith.constant 0 : index
      %c0_13 = arith.constant 0 : index
      %13 = vector.load %arg4[%c0_12, %c0_13] : memref<1x128xf32, #tpu.memory_space<vmem>>, vector<1x128xf32>
      %14 = vector.broadcast %13 : vector<1x128xf32> to vector<8x128xf32>
      %15 = arith.addf %12, %14 : vector<8x128xf32>
      %cst_14 = arith.constant 0.000000e+00 : f32
      %16 = vector.broadcast %cst_14 : f32 to vector<8x128xf32>
      %17 = arith.maximumf %15, %16 : vector<8x128xf32>
      %c0_15 = arith.constant 0 : index
      %c0_16 = arith.constant 0 : index
      %18 = vector.load %arg5[%c0_15, %c0_16] : memref<128x32xf32, #tpu.memory_space<vmem>>, vector<128x32xf32>
      %cst_17 = arith.constant dense<0.000000e+00> : vector<8x32xf32>
      %19 = tpu.matmul %17, %18, %cst_17 {dimension_numbers = #tpu.dot_dimension_numbers<[1], [0], [0], [1], [0, 0, 1, 1], [], []>, precision = #tpu.contract_precision<fp32>} : vector<8x128xf32>, vector<128x32xf32>, vector<8x32xf32> -> vector<8x32xf32>
      %c0_18 = arith.constant 0 : index
      %c0_19 = arith.constant 0 : index
      %20 = vector.load %arg6[%c0_18, %c0_19] : memref<1x32xf32, #tpu.memory_space<vmem>>, vector<1x32xf32>
      %21 = vector.broadcast %20 : vector<1x32xf32> to vector<8x32xf32>
      %22 = arith.addf %19, %21 : vector<8x32xf32>
      %cst_20 = arith.constant 0.000000e+00 : f32
      %23 = vector.broadcast %cst_20 : f32 to vector<8x32xf32>
      %24 = arith.maximumf %22, %23 : vector<8x32xf32>
      %c0_21 = arith.constant 0 : index
      %c0_22 = arith.constant 0 : index
      %25 = vector.load %arg7[%c0_21, %c0_22] : memref<8x32xf32, #tpu.memory_space<vmem>>, vector<8x32xf32>
      tpu.vector_store %arg7[%c0_21, %c0_22], %24 {strides = array<i32>} : memref<8x32xf32, #tpu.memory_space<vmem>>, vector<8x32xf32>,
    } else {
    }
    return
  }
  func.func @transform_0(%arg0: i32, %arg1: i32) -> (i32, i32) {
    %c0_i32 = arith.constant 0 : i32
    return %arg0, %arg1 : i32, i32
  }
  func.func @transform_1(%arg0: i32, %arg1: i32) -> (i32, i32) {
    %c0_i32 = arith.constant 0 : i32
    %c0_i32_0 = arith.constant 0 : i32
    return %arg1, %c0_i32 : i32, i32
  }
  func.func @transform_2(%arg0: i32, %arg1: i32) -> (i32, i32) {
    %c0_i32 = arith.constant 0 : i32
    %c0_i32_0 = arith.constant 0 : i32
    %c0_i32_1 = arith.constant 0 : i32
    return %c0_i32, %c0_i32_0 : i32, i32
  }
  func.func @transform_3(%arg0: i32, %arg1: i32) -> (i32, i32) {
    %c0_i32 = arith.constant 0 : i32
    %c0_i32_0 = arith.constant 0 : i32
    %c0_i32_1 = arith.constant 0 : i32
    return %c0_i32, %c0_i32_0 : i32, i32
  }
  func.func @transform_4(%arg0: i32, %arg1: i32) -> (i32, i32) {
    %c0_i32 = arith.constant 0 : i32
    %c0_i32_0 = arith.constant 0 : i32
    %c0_i32_1 = arith.constant 0 : i32
    return %c0_i32, %c0_i32_0 : i32, i32
  }
  func.func @transform_5(%arg0: i32, %arg1: i32) -> (i32, i32) {
    %c0_i32 = arith.constant 0 : i32
    %c0_i32_0 = arith.constant 0 : i32
    return %arg0, %c0_i32 : i32, i32
  }
}

</mosaic_0001>

<llo_original>
// kernel: fully_connected.1
$region0: #{fully_connected.1}
  #allocation0 [shape = 'u32[]', space=smem, size = 0x4, offset = 0x4, fixed_abs, tag = 'smem constant byte address 0x4 - core index']
  #allocation1 [shape = 'u32[72,128]{1,0:T(1,128)}', space=vmem, size = 0x9000, scoped, tag = 'internal scratch']
  #allocation2 [shape = 'f32[8,128]{1,0:T(8,128)}', space=vmem, size = 0x1000, scoped, tag = 'scratch operand']
  %s0 = inlined_call_operand.vmem [shape: f32[8,128], index: 0, kind: input, shape index: {}]
  %s1 = inlined_call_operand.vmem [shape: f32[128,128], index: 1, kind: input, shape index: {}]
  %s2 = inlined_call_operand.vmem [shape: f32[1,128], index: 2, kind: input, shape index: {}]
  %s3 = inlined_call_operand.vmem [shape: f32[128,32], index: 3, kind: input, shape index: {}]
  %s4 = inlined_call_operand.vmem [shape: f32[1,32], index: 4, kind: input, shape index: {}]
  %s5 = inlined_call_operand.vmem [shape: f32[8,32], index: 5, kind: output, shape index: {}]
  %s6 = sld [smem:[#allocation0]]
  $region38: #{fully_connected.1} parent=0
    _
  %s8 = ssub.s32 1, %s6
  %s9 = scalar_select 0, %s8, %s6
  // Predicated region
  $region2: #{fully_connected.1} parent=0 // pred_check
    _
  $region3: #{fully_connected.1} parent=0 // pred_check_branch
    %11 = sbr.rel (0) target = $region5
  $region4: #{fully_connected.1} parent=0 // pred_region
    _
  $region5: #{fully_connected.1} parent=0 // pred_fallthru
    _
  // Predicated region
  $region6: #{fully_connected.1} parent=0 // pred_check
    _
  $region7: #{fully_connected.1} parent=0 // pred_check_branch
    %13 = sbr.rel (0) target = $region9
  $region8: #{fully_connected.1} parent=0 // pred_region
    _
  $region9: #{fully_connected.1} parent=0 // pred_fallthru
    _
  // Predicated region
  $region10: #{fully_connected.1} parent=0 // pred_check
    _
  $region11: #{fully_connected.1} parent=0 // pred_check_branch
    %15 = sbr.rel (0) target = $region13
  $region12: #{fully_connected.1} parent=0 // pred_region
    _
  $region13: #{fully_connected.1} parent=0 // pred_fallthru
    _
  // Predicated region
  $region14: #{fully_connected.1} parent=0 // pred_check
    _
  $region15: #{fully_connected.1} parent=0 // pred_check_branch
    %17 = sbr.rel (0) target = $region17
  $region16: #{fully_connected.1} parent=0 // pred_region
    _
  $region17: #{fully_connected.1} parent=0 // pred_fallthru
    _
  // Predicated region
  $region18: #{fully_connected.1} parent=0 // pred_check
    _
  $region19: #{fully_connected.1} parent=0 // pred_check_branch
    %19 = sbr.rel (0) target = $region21
  $region20: #{fully_connected.1} parent=0 // pred_region
    _
  $region21: #{fully_connected.1} parent=0 // pred_fallthru
    _
  %p20 = scmp.eq.s32.totalorder 0, 0
  // Predicated region
  $region22: #{fully_connected.1} parent=0 // pred_check
    %p21 = pneg %p20
  $region23: #{fully_connected.1} parent=0 // pred_check_branch
    %23 = sbr.rel (%p21) target = $region25
  $region24: #{fully_connected.1} parent=0 // pred_region
    %24 = vst [vmem:[#allocation2] sm:$0xff] 0.0
  $region25: #{fully_connected.1} parent=0 // pred_fallthru
    _
  %v25 = vld [vmem:[#allocation2] sm:$0xff]
  %v26 = vld [vmem:[%s0] sm:$0xff]
  %v27 = vld [vmem:[%s1] sm:$0xff]
  %v28 = vld [vmem:[%s1 + $0x8] sm:$0xff]
  %v29 = vld [vmem:[%s1 + $0x10] sm:$0xff]
  %v30 = vld [vmem:[%s1 + $0x18] sm:$0xff]
  %v31 = vld [vmem:[%s1 + $0x20] sm:$0xff]
  %v32 = vld [vmem:[%s1 + $0x28] sm:$0xff]
  %v33 = vld [vmem:[%s1 + $0x30] sm:$0xff]
  %v34 = vld [vmem:[%s1 + $0x38] sm:$0xff]
  %v35 = vld [vmem:[%s1 + $0x40] sm:$0xff]
  %v36 = vld [vmem:[%s1 + $0x48] sm:$0xff]
  %v37 = vld [vmem:[%s1 + $0x50] sm:$0xff]
  %v38 = vld [vmem:[%s1 + $0x58] sm:$0xff]
  %v39 = vld [vmem:[%s1 + $0x60] sm:$0xff]
  %v40 = vld [vmem:[%s1 + $0x68] sm:$0xff]
  %v41 = vld [vmem:[%s1 + $0x70] sm:$0xff]
  %v42 = vld [vmem:[%s1 + $0x78] sm:$0xff]
  %v43 = vand.u32 %v42, 4294901760
  %44 = vmatpush.msra.mxu0 %v43
  %v45 = vand.u32 %v41, 4294901760
  %46 = vmatpush.msra.mxu0 %v45
  %v47 = vand.u32 %v40, 4294901760
  %48 = vmatpush.msra.mxu0 %v47
  %v49 = vand.u32 %v39, 4294901760
  %50 = vmatpush.msra.mxu0 %v49
  %v51 = vand.u32 %v38, 4294901760
  %52 = vmatpush.msra.mxu0 %v51
  %v53 = vand.u32 %v37, 4294901760
  %54 = vmatpush.msra.mxu0 %v53
  %v55 = vand.u32 %v36, 4294901760
  %56 = vmatpush.msra.mxu0 %v55
  %v57 = vand.u32 %v35, 4294901760
  %58 = vmatpush.msra.mxu0 %v57
  %v59 = vand.u32 %v34, 4294901760
  %60 = vmatpush.msra.mxu0 %v59
  %v61 = vand.u32 %v33, 4294901760
  %62 = vmatpush.msra.mxu0 %v61
  %v63 = vand.u32 %v32, 4294901760
  %64 = vmatpush.msra.mxu0 %v63
  %v65 = vand.u32 %v31, 4294901760
  %66 = vmatpush.msra.mxu0 %v65
  %v67 = vand.u32 %v30, 4294901760
  %68 = vmatpush.msra.mxu0 %v67
  %v69 = vand.u32 %v29, 4294901760
  %70 = vmatpush.msra.mxu0 %v69
  %v71 = vand.u32 %v28, 4294901760
  %72 = vmatpush.msra.mxu0 %v71
  %v73 = vand.u32 %v27, 4294901760
  %74 = vmatpush.msra.mxu0 %v73
  %v75 = vand.u32 %v26, 4294901760
  %v76 = vsub.f32 %v26, %v75
  %v77 = vand.u32 %v76, 4294901760
  %v78 = vsub.f32 %v76, %v77
  %v79 = vand.u32 %v78, 4294901760
  %80 = vmatmul.f32.gmra.mxu0 %v79
  %v81 = vpop.f32.mrf.mxu0
  %v82 = vadd.f32 0.0, %v81
  %83 = vdwg.mxu0
  %v84 = vand.u32 %v42, 4294901760
  %v85 = vsub.f32 %v42, %v84
  %v86 = vand.u32 %v85, 4294901760
  %v87 = vsub.f32 %v85, %v86
  %v88 = vand.u32 %v87, 4294901760
  %89 = vmatpush.msra.mxu0 %v88
  %v90 = vand.u32 %v41, 4294901760
  %v91 = vsub.f32 %v41, %v90
  %v92 = vand.u32 %v91, 4294901760
  %v93 = vsub.f32 %v91, %v92
  %v94 = vand.u32 %v93, 4294901760
  %95 = vmatpush.msra.mxu0 %v94
  %v96 = vand.u32 %v40, 4294901760
  %v97 = vsub.f32 %v40, %v96
  %v98 = vand.u32 %v97, 4294901760
  %v99 = vsub.f32 %v97, %v98
  %v100 = vand.u32 %v99, 4294901760
  %101 = vmatpush.msra.mxu0 %v100
  %v102 = vand.u32 %v39, 4294901760
  %v103 = vsub.f32 %v39, %v102
  %v104 = vand.u32 %v103, 4294901760
  %v105 = vsub.f32 %v103, %v104
  %v106 = vand.u32 %v105, 4294901760
  %107 = vmatpush.msra.mxu0 %v106
  %v108 = vand.u32 %v38, 4294901760
  %v109 = vsub.f32 %v38, %v108
  %v110 = vand.u32 %v109, 4294901760
  %v111 = vsub.f32 %v109, %v110
  %v112 = vand.u32 %v111, 4294901760
  %113 = vmatpush.msra.mxu0 %v112
  %v114 = vand.u32 %v37, 4294901760
  %v115 = vsub.f32 %v37, %v114
  %v116 = vand.u32 %v115, 4294901760
  %v117 = vsub.f32 %v115, %v116
  %v118 = vand.u32 %v117, 4294901760
  %119 = vmatpush.msra.mxu0 %v118
  %v120 = vand.u32 %v36, 4294901760
  %v121 = vsub.f32 %v36, %v120
  %v122 = vand.u32 %v121, 4294901760
  %v123 = vsub.f32 %v121, %v122
  %v124 = vand.u32 %v123, 4294901760
  %125 = vmatpush.msra.mxu0 %v124
  %v126 = vand.u32 %v35, 4294901760
  %v127 = vsub.f32 %v35, %v126
  %v128 = vand.u32 %v127, 4294901760
  %v129 = vsub.f32 %v127, %v128
  %v130 = vand.u32 %v129, 4294901760
  %131 = vmatpush.msra.mxu0 %v130
  %v132 = vand.u32 %v34, 4294901760
  %v133 = vsub.f32 %v34, %v132
  %v134 = vand.u32 %v133, 4294901760
  %v135 = vsub.f32 %v133, %v134
  %v136 = vand.u32 %v135, 4294901760
  %137 = vmatpush.msra.mxu0 %v136
  %v138 = vand.u32 %v33, 4294901760
  %v139 = vsub.f32 %v33, %v138
  %v140 = vand.u32 %v139, 4294901760
  %v141 = vsub.f32 %v139, %v140
  %v142 = vand.u32 %v141, 4294901760
  %143 = vmatpush.msra.mxu0 %v142
  %v144 = vand.u32 %v32, 4294901760
  %v145 = vsub.f32 %v32, %v144
  %v146 = vand.u32 %v145, 4294901760
  %v147 = vsub.f32 %v145, %v146
  %v148 = vand.u32 %v147, 4294901760
  %149 = vmatpush.msra.mxu0 %v148
  %v150 = vand.u32 %v31, 4294901760
  %v151 = vsub.f32 %v31, %v150
  %v152 = vand.u32 %v151, 4294901760
  %v153 = vsub.f32 %v151, %v152
  %v154 = vand.u32 %v153, 4294901760
  %155 = vmatpush.msra.mxu0 %v154
  %v156 = vand.u32 %v30, 4294901760
  %v157 = vsub.f32 %v30, %v156
  %v158 = vand.u32 %v157, 4294901760
  %v159 = vsub.f32 %v157, %v158
  %v160 = vand.u32 %v159, 4294901760
  %161 = vmatpush.msra.mxu0 %v160
  %v162 = vand.u32 %v29, 4294901760
  %v163 = vsub.f32 %v29, %v162
  %v164 = vand.u32 %v163, 4294901760
  %v165 = vsub.f32 %v163, %v164
  %v166 = vand.u32 %v165, 4294901760
  %167 = vmatpush.msra.mxu0 %v166
  %v168 = vand.u32 %v28, 4294901760
  %v169 = vsub.f32 %v28, %v168
  %v170 = vand.u32 %v169, 4294901760
  %v171 = vsub.f32 %v169, %v170
  %v172 = vand.u32 %v171, 4294901760
  %173 = vmatpush.msra.mxu0 %v172
  %v174 = vand.u32 %v27, 4294901760
  %v175 = vsub.f32 %v27, %v174
  %v176 = vand.u32 %v175, 4294901760
  %v177 = vsub.f32 %v175, %v176
  %v178 = vand.u32 %v177, 4294901760
  %179 = vmatpush.msra.mxu0 %v178
  %v180 = vand.u32 %v26, 4294901760
  %181 = vmatmul.f32.gmra.mxu0 %v180
  %v182 = vpop.f32.mrf.mxu0
  %v183 = vadd.f32 %v82, %v182
  %184 = vdwg.mxu0
  %v185 = vand.u32 %v42, 4294901760
  %v186 = vsub.f32 %v42, %v185
  %187 = vmatpush.msra.mxu0 %v186
  %v188 = vand.u32 %v41, 4294901760
  %v189 = vsub.f32 %v41, %v188
  %190 = vmatpush.msra.mxu0 %v189
  %v191 = vand.u32 %v40, 4294901760
  %v192 = vsub.f32 %v40, %v191
  %193 = vmatpush.msra.mxu0 %v192
  %v194 = vand.u32 %v39, 4294901760
  %v195 = vsub.f32 %v39, %v194
  %196 = vmatpush.msra.mxu0 %v195
  %v197 = vand.u32 %v38, 4294901760
  %v198 = vsub.f32 %v38, %v197
  %199 = vmatpush.msra.mxu0 %v198
  %v200 = vand.u32 %v37, 4294901760
  %v201 = vsub.f32 %v37, %v200
  %202 = vmatpush.msra.mxu0 %v201
  %v203 = vand.u32 %v36, 4294901760
  %v204 = vsub.f32 %v36, %v203
  %205 = vmatpush.msra.mxu0 %v204
  %v206 = vand.u32 %v35, 4294901760
  %v207 = vsub.f32 %v35, %v206
  %208 = vmatpush.msra.mxu0 %v207
  %v209 = vand.u32 %v34, 4294901760
  %v210 = vsub.f32 %v34, %v209
  %211 = vmatpush.msra.mxu0 %v210
  %v212 = vand.u32 %v33, 4294901760
  %v213 = vsub.f32 %v33, %v212
  %214 = vmatpush.msra.mxu0 %v213
  %v215 = vand.u32 %v32, 4294901760
  %v216 = vsub.f32 %v32, %v215
  %217 = vmatpush.msra.mxu0 %v216
  %v218 = vand.u32 %v31, 4294901760
  %v219 = vsub.f32 %v31, %v218
  %220 = vmatpush.msra.mxu0 %v219
  %v221 = vand.u32 %v30, 4294901760
  %v222 = vsub.f32 %v30, %v221
  %223 = vmatpush.msra.mxu0 %v222
  %v224 = vand.u32 %v29, 4294901760
  %v225 = vsub.f32 %v29, %v224
  %226 = vmatpush.msra.mxu0 %v225
  %v227 = vand.u32 %v28, 4294901760
  %v228 = vsub.f32 %v28, %v227
  %229 = vmatpush.msra.mxu0 %v228
  %v230 = vand.u32 %v27, 4294901760
  %v231 = vsub.f32 %v27, %v230
  %232 = vmatpush.msra.mxu0 %v231
  %v233 = vand.u32 %v26, 4294901760
  %v234 = vsub.f32 %v26, %v233
  %235 = vmatmul.f32.gmra.mxu0 %v234
  %v236 = vpop.f32.mrf.mxu0
  %v237 = vadd.f32 %v183, %v236
  %238 = vdwg.mxu0
  %v239 = vand.u32 %v42, 4294901760
  %240 = vmatpush.msra.mxu0 %v239
  %v241 = vand.u32 %v41, 4294901760
  %242 = vmatpush.msra.mxu0 %v241
  %v243 = vand.u32 %v40, 4294901760
  %244 = vmatpush.msra.mxu0 %v243
  %v245 = vand.u32 %v39, 4294901760
  %246 = vmatpush.msra.mxu0 %v245
  %v247 = vand.u32 %v38, 4294901760
  %248 = vmatpush.msra.mxu0 %v247
  %v249 = vand.u32 %v37, 4294901760
  %250 = vmatpush.msra.mxu0 %v249
  %v251 = vand.u32 %v36, 4294901760
  %252 = vmatpush.msra.mxu0 %v251
  %v253 = vand.u32 %v35, 4294901760
  %254 = vmatpush.msra.mxu0 %v253
  %v255 = vand.u32 %v34, 4294901760
  %256 = vmatpush.msra.mxu0 %v255
  %v257 = vand.u32 %v33, 4294901760
  %258 = vmatpush.msra.mxu0 %v257
  %v259 = vand.u32 %v32, 4294901760
  %260 = vmatpush.msra.mxu0 %v259
  %v261 = vand.u32 %v31, 4294901760
  %262 = vmatpush.msra.mxu0 %v261
  %v263 = vand.u32 %v30, 4294901760
  %264 = vmatpush.msra.mxu0 %v263
  %v265 = vand.u32 %v29, 4294901760
  %266 = vmatpush.msra.mxu0 %v265
  %v267 = vand.u32 %v28, 4294901760
  %268 = vmatpush.msra.mxu0 %v267
  %v269 = vand.u32 %v27, 4294901760
  %270 = vmatpush.msra.mxu0 %v269
  %v271 = vand.u32 %v26, 4294901760
  %v272 = vsub.f32 %v26, %v271
  %v273 = vand.u32 %v272, 4294901760
  %274 = vmatmul.f32.gmra.mxu0 %v273
  %v275 = vpop.f32.mrf.mxu0
  %v276 = vadd.f32 %v237, %v275
  %277 = vdwg.mxu0
  %v278 = vand.u32 %v42, 4294901760
  %v279 = vsub.f32 %v42, %v278
  %v280 = vand.u32 %v279, 4294901760
  %281 = vmatpush.msra.mxu0 %v280
  %v282 = vand.u32 %v41, 4294901760
  %v283 = vsub.f32 %v41, %v282
  %v284 = vand.u32 %v283, 4294901760
  %285 = vmatpush.msra.mxu0 %v284
  %v286 = vand.u32 %v40, 4294901760
  %v287 = vsub.f32 %v40, %v286
  %v288 = vand.u32 %v287, 4294901760
  %289 = vmatpush.msra.mxu0 %v288
  %v290 = vand.u32 %v39, 4294901760
  %v291 = vsub.f32 %v39, %v290
  %v292 = vand.u32 %v291, 4294901760
  %293 = vmatpush.msra.mxu0 %v292
  %v294 = vand.u32 %v38, 4294901760
  %v295 = vsub.f32 %v38, %v294
  %v296 = vand.u32 %v295, 4294901760
  %297 = vmatpush.msra.mxu0 %v296
  %v298 = vand.u32 %v37, 4294901760
  %v299 = vsub.f32 %v37, %v298
  %v300 = vand.u32 %v299, 4294901760
  %301 = vmatpush.msra.mxu0 %v300
  %v302 = vand.u32 %v36, 4294901760
  %v303 = vsub.f32 %v36, %v302
  %v304 = vand.u32 %v303, 4294901760
  %305 = vmatpush.msra.mxu0 %v304
  %v306 = vand.u32 %v35, 4294901760
  %v307 = vsub.f32 %v35, %v306
  %v308 = vand.u32 %v307, 4294901760
  %309 = vmatpush.msra.mxu0 %v308
  %v310 = vand.u32 %v34, 4294901760
  %v311 = vsub.f32 %v34, %v310
  %v312 = vand.u32 %v311, 4294901760
  %313 = vmatpush.msra.mxu0 %v312
  %v314 = vand.u32 %v33, 4294901760
  %v315 = vsub.f32 %v33, %v314
  %v316 = vand.u32 %v315, 4294901760
  %317 = vmatpush.msra.mxu0 %v316
  %v318 = vand.u32 %v32, 4294901760
  %v319 = vsub.f32 %v32, %v318
  %v320 = vand.u32 %v319, 4294901760
  %321 = vmatpush.msra.mxu0 %v320
  %v322 = vand.u32 %v31, 4294901760
  %v323 = vsub.f32 %v31, %v322
  %v324 = vand.u32 %v323, 4294901760
  %325 = vmatpush.msra.mxu0 %v324
  %v326 = vand.u32 %v30, 4294901760
  %v327 = vsub.f32 %v30, %v326
  %v328 = vand.u32 %v327, 4294901760
  %329 = vmatpush.msra.mxu0 %v328
  %v330 = vand.u32 %v29, 4294901760
  %v331 = vsub.f32 %v29, %v330
  %v332 = vand.u32 %v331, 4294901760
  %333 = vmatpush.msra.mxu0 %v332
  %v334 = vand.u32 %v28, 4294901760
  %v335 = vsub.f32 %v28, %v334
  %v336 = vand.u32 %v335, 4294901760
  %337 = vmatpush.msra.mxu0 %v336
  %v338 = vand.u32 %v27, 4294901760
  %v339 = vsub.f32 %v27, %v338
  %v340 = vand.u32 %v339, 4294901760
  %341 = vmatpush.msra.mxu0 %v340
  %v342 = vand.u32 %v26, 4294901760
  %343 = vmatmul.f32.gmra.mxu0 %v342
  %v344 = vpop.f32.mrf.mxu0
  %v345 = vadd.f32 %v276, %v344
  %346 = vdwg.mxu0
  %v347 = vand.u32 %v42, 4294901760
  %348 = vmatpush.msra.mxu0 %v347
  %v349 = vand.u32 %v41, 4294901760
  %350 = vmatpush.msra.mxu0 %v349
  %v351 = vand.u32 %v40, 4294901760
  %352 = vmatpush.msra.mxu0 %v351
  %v353 = vand.u32 %v39, 4294901760
  %354 = vmatpush.msra.mxu0 %v353
  %v355 = vand.u32 %v38, 4294901760
  %356 = vmatpush.msra.mxu0 %v355
  %v357 = vand.u32 %v37, 4294901760
  %358 = vmatpush.msra.mxu0 %v357
  %v359 = vand.u32 %v36, 4294901760
  %360 = vmatpush.msra.mxu0 %v359
  %v361 = vand.u32 %v35, 4294901760
  %362 = vmatpush.msra.mxu0 %v361
  %v363 = vand.u32 %v34, 4294901760
  %364 = vmatpush.msra.mxu0 %v363
  %v365 = vand.u32 %v33, 4294901760
  %366 = vmatpush.msra.mxu0 %v365
  %v367 = vand.u32 %v32, 4294901760
  %368 = vmatpush.msra.mxu0 %v367
  %v369 = vand.u32 %v31, 4294901760
  %370 = vmatpush.msra.mxu0 %v369
  %v371 = vand.u32 %v30, 4294901760
  %372 = vmatpush.msra.mxu0 %v371
  %v373 = vand.u32 %v29, 4294901760
  %374 = vmatpush.msra.mxu0 %v373
  %v375 = vand.u32 %v28, 4294901760
  %376 = vmatpush.msra.mxu0 %v375
  %v377 = vand.u32 %v27, 4294901760
  %378 = vmatpush.msra.mxu0 %v377
  %v379 = vand.u32 %v26, 4294901760
  %380 = vmatmul.f32.gmra.mxu0 %v379
  %v381 = vpop.f32.mrf.mxu0
  %v382 = vadd.f32 %v345, %v381
  %383 = vdwg.mxu0
  %v384 = vadd.f32 %v25, %v382
  %385 = vst [vmem:[#allocation2] sm:$0xff] %v384
  // Predicated region
  $region26: #{fully_connected.1} parent=0 // pred_check
    %p386 = pneg %p20
  $region27: #{fully_connected.1} parent=0 // pred_check_branch
    %388 = sbr.rel (%p386) target = $region29
  $region28: #{fully_connected.1} parent=0 // pred_region
    %v389 = vld [vmem:[#allocation2] sm:$0xff]
    %v390 = vld [vmem:[%s2] sm:$0x1]
    %v392 = vperm.slane %v390, 0
    %v394 = vadd.f32 %v389, %v392
    %v395 = vmax.f32 %v394, 0.0
    %v396 = vld [vmem:[%s3] sm:$0xff]
    %v397 = vld [vmem:[%s3 + $0x8] sm:$0xff]
    %v398 = vld [vmem:[%s3 + $0x10] sm:$0xff]
    %v399 = vld [vmem:[%s3 + $0x18] sm:$0xff]
    %v400 = vld [vmem:[%s3 + $0x20] sm:$0xff]
    %v401 = vld [vmem:[%s3 + $0x28] sm:$0xff]
    %v402 = vld [vmem:[%s3 + $0x30] sm:$0xff]
    %v403 = vld [vmem:[%s3 + $0x38] sm:$0xff]
    %v404 = vld [vmem:[%s3 + $0x40] sm:$0xff]
    %v405 = vld [vmem:[%s3 + $0x48] sm:$0xff]
    %v406 = vld [vmem:[%s3 + $0x50] sm:$0xff]
    %v407 = vld [vmem:[%s3 + $0x58] sm:$0xff]
    %v408 = vld [vmem:[%s3 + $0x60] sm:$0xff]
    %v409 = vld [vmem:[%s3 + $0x68] sm:$0xff]
    %v410 = vld [vmem:[%s3 + $0x70] sm:$0xff]
    %v411 = vld [vmem:[%s3 + $0x78] sm:$0xff]
    %v412 = vld [vmem:[%s4] sm:$0x1]
    %v414 = vperm.slane %v412, 0
    %v416 = vand.u32 %v411, 4294901760
    %417 = vmatpush.msra.mxu0 %v416
    %v418 = vand.u32 %v410, 4294901760
    %419 = vmatpush.msra.mxu0 %v418
    %v420 = vand.u32 %v409, 4294901760
    %421 = vmatpush.msra.mxu0 %v420
    %v422 = vand.u32 %v408, 4294901760
    %423 = vmatpush.msra.mxu0 %v422
    %v424 = vand.u32 %v407, 4294901760
    %425 = vmatpush.msra.mxu0 %v424
    %v426 = vand.u32 %v406, 4294901760
    %427 = vmatpush.msra.mxu0 %v426
    %v428 = vand.u32 %v405, 4294901760
    %429 = vmatpush.msra.mxu0 %v428
    %v430 = vand.u32 %v404, 4294901760
    %431 = vmatpush.msra.mxu0 %v430
    %v432 = vand.u32 %v403, 4294901760
    %433 = vmatpush.msra.mxu0 %v432
    %v434 = vand.u32 %v402, 4294901760
    %435 = vmatpush.msra.mxu0 %v434
    %v436 = vand.u32 %v401, 4294901760
    %437 = vmatpush.msra.mxu0 %v436
    %v438 = vand.u32 %v400, 4294901760
    %439 = vmatpush.msra.mxu0 %v438
    %v440 = vand.u32 %v399, 4294901760
    %441 = vmatpush.msra.mxu0 %v440
    %v442 = vand.u32 %v398, 4294901760
    %443 = vmatpush.msra.mxu0 %v442
    %v444 = vand.u32 %v397, 4294901760
    %445 = vmatpush.msra.mxu0 %v444
    %v446 = vand.u32 %v396, 4294901760
    %447 = vmatpush.msra.mxu0 %v446
    %v448 = vand.u32 %v395, 4294901760
    %v449 = vsub.f32 %v395, %v448
    %v450 = vand.u32 %v449, 4294901760
    %v451 = vsub.f32 %v449, %v450
    %v452 = vand.u32 %v451, 4294901760
    %453 = vmatmul.f32.gmra.mxu0 %v452
    %v454 = vpop.f32.mrf.mxu0
    %v455 = vadd.f32 %v414, %v454
    %456 = vdwg.mxu0
    %v457 = vand.u32 %v411, 4294901760
    %v458 = vsub.f32 %v411, %v457
    %v459 = vand.u32 %v458, 4294901760
    %v460 = vsub.f32 %v458, %v459
    %v461 = vand.u32 %v460, 4294901760
    %462 = vmatpush.msra.mxu0 %v461
    %v463 = vand.u32 %v410, 4294901760
    %v464 = vsub.f32 %v410, %v463
    %v465 = vand.u32 %v464, 4294901760
    %v466 = vsub.f32 %v464, %v465
    %v467 = vand.u32 %v466, 4294901760
    %468 = vmatpush.msra.mxu0 %v467
    %v469 = vand.u32 %v409, 4294901760
    %v470 = vsub.f32 %v409, %v469
    %v471 = vand.u32 %v470, 4294901760
    %v472 = vsub.f32 %v470, %v471
    %v473 = vand.u32 %v472, 4294901760
    %474 = vmatpush.msra.mxu0 %v473
    %v475 = vand.u32 %v408, 4294901760
    %v476 = vsub.f32 %v408, %v475
    %v477 = vand.u32 %v476, 4294901760
    %v478 = vsub.f32 %v476, %v477
    %v479 = vand.u32 %v478, 4294901760
    %480 = vmatpush.msra.mxu0 %v479
    %v481 = vand.u32 %v407, 4294901760
    %v482 = vsub.f32 %v407, %v481
    %v483 = vand.u32 %v482, 4294901760
    %v484 = vsub.f32 %v482, %v483
    %v485 = vand.u32 %v484, 4294901760
    %486 = vmatpush.msra.mxu0 %v485
    %v487 = vand.u32 %v406, 4294901760
    %v488 = vsub.f32 %v406, %v487
    %v489 = vand.u32 %v488, 4294901760
    %v490 = vsub.f32 %v488, %v489
    %v491 = vand.u32 %v490, 4294901760
    %492 = vmatpush.msra.mxu0 %v491
    %v493 = vand.u32 %v405, 4294901760
    %v494 = vsub.f32 %v405, %v493
    %v495 = vand.u32 %v494, 4294901760
    %v496 = vsub.f32 %v494, %v495
    %v497 = vand.u32 %v496, 4294901760
    %498 = vmatpush.msra.mxu0 %v497
    %v499 = vand.u32 %v404, 4294901760
    %v500 = vsub.f32 %v404, %v499
    %v501 = vand.u32 %v500, 4294901760
    %v502 = vsub.f32 %v500, %v501
    %v503 = vand.u32 %v502, 4294901760
    %504 = vmatpush.msra.mxu0 %v503
    %v505 = vand.u32 %v403, 4294901760
    %v506 = vsub.f32 %v403, %v505
    %v507 = vand.u32 %v506, 4294901760
    %v508 = vsub.f32 %v506, %v507
    %v509 = vand.u32 %v508, 4294901760
    %510 = vmatpush.msra.mxu0 %v509
    %v511 = vand.u32 %v402, 4294901760
    %v512 = vsub.f32 %v402, %v511
    %v513 = vand.u32 %v512, 4294901760
    %v514 = vsub.f32 %v512, %v513
    %v515 = vand.u32 %v514, 4294901760
    %516 = vmatpush.msra.mxu0 %v515
    %v517 = vand.u32 %v401, 4294901760
    %v518 = vsub.f32 %v401, %v517
    %v519 = vand.u32 %v518, 4294901760
    %v520 = vsub.f32 %v518, %v519
    %v521 = vand.u32 %v520, 4294901760
    %522 = vmatpush.msra.mxu0 %v521
    %v523 = vand.u32 %v400, 4294901760
    %v524 = vsub.f32 %v400, %v523
    %v525 = vand.u32 %v524, 4294901760
    %v526 = vsub.f32 %v524, %v525
    %v527 = vand.u32 %v526, 4294901760
    %528 = vmatpush.msra.mxu0 %v527
    %v529 = vand.u32 %v399, 4294901760
    %v530 = vsub.f32 %v399, %v529
    %v531 = vand.u32 %v530, 4294901760
    %v532 = vsub.f32 %v530, %v531
    %v533 = vand.u32 %v532, 4294901760
    %534 = vmatpush.msra.mxu0 %v533
    %v535 = vand.u32 %v398, 4294901760
    %v536 = vsub.f32 %v398, %v535
    %v537 = vand.u32 %v536, 4294901760
    %v538 = vsub.f32 %v536, %v537
    %v539 = vand.u32 %v538, 4294901760
    %540 = vmatpush.msra.mxu0 %v539
    %v541 = vand.u32 %v397, 4294901760
    %v542 = vsub.f32 %v397, %v541
    %v543 = vand.u32 %v542, 4294901760
    %v544 = vsub.f32 %v542, %v543
    %v545 = vand.u32 %v544, 4294901760
    %546 = vmatpush.msra.mxu0 %v545
    %v547 = vand.u32 %v396, 4294901760
    %v548 = vsub.f32 %v396, %v547
    %v549 = vand.u32 %v548, 4294901760
    %v550 = vsub.f32 %v548, %v549
    %v551 = vand.u32 %v550, 4294901760
    %552 = vmatpush.msra.mxu0 %v551
    %v553 = vand.u32 %v395, 4294901760
    %554 = vmatmul.f32.gmra.mxu0 %v553
    %v555 = vpop.f32.mrf.mxu0
    %v556 = vadd.f32 %v455, %v555
    %557 = vdwg.mxu0
    %v558 = vand.u32 %v411, 4294901760
    %v559 = vsub.f32 %v411, %v558
    %560 = vmatpush.msra.mxu0 %v559
    %v561 = vand.u32 %v410, 4294901760
    %v562 = vsub.f32 %v410, %v561
    %563 = vmatpush.msra.mxu0 %v562
    %v564 = vand.u32 %v409, 4294901760
    %v565 = vsub.f32 %v409, %v564
    %566 = vmatpush.msra.mxu0 %v565
    %v567 = vand.u32 %v408, 4294901760
    %v568 = vsub.f32 %v408, %v567
    %569 = vmatpush.msra.mxu0 %v568
    %v570 = vand.u32 %v407, 4294901760
    %v571 = vsub.f32 %v407, %v570
    %572 = vmatpush.msra.mxu0 %v571
    %v573 = vand.u32 %v406, 4294901760
    %v574 = vsub.f32 %v406, %v573
    %575 = vmatpush.msra.mxu0 %v574
    %v576 = vand.u32 %v405, 4294901760
    %v577 = vsub.f32 %v405, %v576
    %578 = vmatpush.msra.mxu0 %v577
    %v579 = vand.u32 %v404, 4294901760
    %v580 = vsub.f32 %v404, %v579
    %581 = vmatpush.msra.mxu0 %v580
    %v582 = vand.u32 %v403, 4294901760
    %v583 = vsub.f32 %v403, %v582
    %584 = vmatpush.msra.mxu0 %v583
    %v585 = vand.u32 %v402, 4294901760
    %v586 = vsub.f32 %v402, %v585
    %587 = vmatpush.msra.mxu0 %v586
    %v588 = vand.u32 %v401, 4294901760
    %v589 = vsub.f32 %v401, %v588
    %590 = vmatpush.msra.mxu0 %v589
    %v591 = vand.u32 %v400, 4294901760
    %v592 = vsub.f32 %v400, %v591
    %593 = vmatpush.msra.mxu0 %v592
    %v594 = vand.u32 %v399, 4294901760
    %v595 = vsub.f32 %v399, %v594
    %596 = vmatpush.msra.mxu0 %v595
    %v597 = vand.u32 %v398, 4294901760
    %v598 = vsub.f32 %v398, %v597
    %599 = vmatpush.msra.mxu0 %v598
    %v600 = vand.u32 %v397, 4294901760
    %v601 = vsub.f32 %v397, %v600
    %602 = vmatpush.msra.mxu0 %v601
    %v603 = vand.u32 %v396, 4294901760
    %v604 = vsub.f32 %v396, %v603
    %605 = vmatpush.msra.mxu0 %v604
    %v606 = vand.u32 %v395, 4294901760
    %v607 = vsub.f32 %v395, %v606
    %608 = vmatmul.f32.gmra.mxu0 %v607
    %v609 = vpop.f32.mrf.mxu0
    %v610 = vadd.f32 %v556, %v609
    %611 = vdwg.mxu0
    %v612 = vand.u32 %v411, 4294901760
    %613 = vmatpush.msra.mxu0 %v612
    %v614 = vand.u32 %v410, 4294901760
    %615 = vmatpush.msra.mxu0 %v614
    %v616 = vand.u32 %v409, 4294901760
    %617 = vmatpush.msra.mxu0 %v616
    %v618 = vand.u32 %v408, 4294901760
    %619 = vmatpush.msra.mxu0 %v618
    %v620 = vand.u32 %v407, 4294901760
    %621 = vmatpush.msra.mxu0 %v620
    %v622 = vand.u32 %v406, 4294901760
    %623 = vmatpush.msra.mxu0 %v622
    %v624 = vand.u32 %v405, 4294901760
    %625 = vmatpush.msra.mxu0 %v624
    %v626 = vand.u32 %v404, 4294901760
    %627 = vmatpush.msra.mxu0 %v626
    %v628 = vand.u32 %v403, 4294901760
    %629 = vmatpush.msra.mxu0 %v628
    %v630 = vand.u32 %v402, 4294901760
    %631 = vmatpush.msra.mxu0 %v630
    %v632 = vand.u32 %v401, 4294901760
    %633 = vmatpush.msra.mxu0 %v632
    %v634 = vand.u32 %v400, 4294901760
    %635 = vmatpush.msra.mxu0 %v634
    %v636 = vand.u32 %v399, 4294901760
    %637 = vmatpush.msra.mxu0 %v636
    %v638 = vand.u32 %v398, 4294901760
    %639 = vmatpush.msra.mxu0 %v638
    %v640 = vand.u32 %v397, 4294901760
    %641 = vmatpush.msra.mxu0 %v640
    %v642 = vand.u32 %v396, 4294901760
    %643 = vmatpush.msra.mxu0 %v642
    %v644 = vand.u32 %v395, 4294901760
    %v645 = vsub.f32 %v395, %v644
    %v646 = vand.u32 %v645, 4294901760
    %647 = vmatmul.f32.gmra.mxu0 %v646
    %v648 = vpop.f32.mrf.mxu0
    %v649 = vadd.f32 %v610, %v648
    %650 = vdwg.mxu0
    %v651 = vand.u32 %v411, 4294901760
    %v652 = vsub.f32 %v411, %v651
    %v653 = vand.u32 %v652, 4294901760
    %654 = vmatpush.msra.mxu0 %v653
    %v655 = vand.u32 %v410, 4294901760
    %v656 = vsub.f32 %v410, %v655
    %v657 = vand.u32 %v656, 4294901760
    %658 = vmatpush.msra.mxu0 %v657
    %v659 = vand.u32 %v409, 4294901760
    %v660 = vsub.f32 %v409, %v659
    %v661 = vand.u32 %v660, 4294901760
    %662 = vmatpush.msra.mxu0 %v661
    %v663 = vand.u32 %v408, 4294901760
    %v664 = vsub.f32 %v408, %v663
    %v665 = vand.u32 %v664, 4294901760
    %666 = vmatpush.msra.mxu0 %v665
    %v667 = vand.u32 %v407, 4294901760
    %v668 = vsub.f32 %v407, %v667
    %v669 = vand.u32 %v668, 4294901760
    %670 = vmatpush.msra.mxu0 %v669
    %v671 = vand.u32 %v406, 4294901760
    %v672 = vsub.f32 %v406, %v671
    %v673 = vand.u32 %v672, 4294901760
    %674 = vmatpush.msra.mxu0 %v673
    %v675 = vand.u32 %v405, 4294901760
    %v676 = vsub.f32 %v405, %v675
    %v677 = vand.u32 %v676, 4294901760
    %678 = vmatpush.msra.mxu0 %v677
    %v679 = vand.u32 %v404, 4294901760
    %v680 = vsub.f32 %v404, %v679
    %v681 = vand.u32 %v680, 4294901760
    %682 = vmatpush.msra.mxu0 %v681
    %v683 = vand.u32 %v403, 4294901760
    %v684 = vsub.f32 %v403, %v683
    %v685 = vand.u32 %v684, 4294901760
    %686 = vmatpush.msra.mxu0 %v685
    %v687 = vand.u32 %v402, 4294901760
    %v688 = vsub.f32 %v402, %v687
    %v689 = vand.u32 %v688, 4294901760
    %690 = vmatpush.msra.mxu0 %v689
    %v691 = vand.u32 %v401, 4294901760
    %v692 = vsub.f32 %v401, %v691
    %v693 = vand.u32 %v692, 4294901760
    %694 = vmatpush.msra.mxu0 %v693
    %v695 = vand.u32 %v400, 4294901760
    %v696 = vsub.f32 %v400, %v695
    %v697 = vand.u32 %v696, 4294901760
    %698 = vmatpush.msra.mxu0 %v697
    %v699 = vand.u32 %v399, 4294901760
    %v700 = vsub.f32 %v399, %v699
    %v701 = vand.u32 %v700, 4294901760
    %702 = vmatpush.msra.mxu0 %v701
    %v703 = vand.u32 %v398, 4294901760
    %v704 = vsub.f32 %v398, %v703
    %v705 = vand.u32 %v704, 4294901760
    %706 = vmatpush.msra.mxu0 %v705
    %v707 = vand.u32 %v397, 4294901760
    %v708 = vsub.f32 %v397, %v707
    %v709 = vand.u32 %v708, 4294901760
    %710 = vmatpush.msra.mxu0 %v709
    %v711 = vand.u32 %v396, 4294901760
    %v712 = vsub.f32 %v396, %v711
    %v713 = vand.u32 %v712, 4294901760
    %714 = vmatpush.msra.mxu0 %v713
    %v715 = vand.u32 %v395, 4294901760
    %716 = vmatmul.f32.gmra.mxu0 %v715
    %v717 = vpop.f32.mrf.mxu0
    %v718 = vadd.f32 %v649, %v717
    %719 = vdwg.mxu0
    %v720 = vand.u32 %v411, 4294901760
    %721 = vmatpush.msra.mxu0 %v720
    %v722 = vand.u32 %v410, 4294901760
    %723 = vmatpush.msra.mxu0 %v722
    %v724 = vand.u32 %v409, 4294901760
    %725 = vmatpush.msra.mxu0 %v724
    %v726 = vand.u32 %v408, 4294901760
    %727 = vmatpush.msra.mxu0 %v726
    %v728 = vand.u32 %v407, 4294901760
    %729 = vmatpush.msra.mxu0 %v728
    %v730 = vand.u32 %v406, 4294901760
    %731 = vmatpush.msra.mxu0 %v730
    %v732 = vand.u32 %v405, 4294901760
    %733 = vmatpush.msra.mxu0 %v732
    %v734 = vand.u32 %v404, 4294901760
    %735 = vmatpush.msra.mxu0 %v734
    %v736 = vand.u32 %v403, 4294901760
    %737 = vmatpush.msra.mxu0 %v736
    %v738 = vand.u32 %v402, 4294901760
    %739 = vmatpush.msra.mxu0 %v738
    %v740 = vand.u32 %v401, 4294901760
    %741 = vmatpush.msra.mxu0 %v740
    %v742 = vand.u32 %v400, 4294901760
    %743 = vmatpush.msra.mxu0 %v742
    %v744 = vand.u32 %v399, 4294901760
    %745 = vmatpush.msra.mxu0 %v744
    %v746 = vand.u32 %v398, 4294901760
    %747 = vmatpush.msra.mxu0 %v746
    %v748 = vand.u32 %v397, 4294901760
    %749 = vmatpush.msra.mxu0 %v748
    %v750 = vand.u32 %v396, 4294901760
    %751 = vmatpush.msra.mxu0 %v750
    %v752 = vand.u32 %v395, 4294901760
    %753 = vmatmul.f32.gmra.mxu0 %v752
    %v754 = vpop.f32.mrf.mxu0
    %v755 = vadd.f32 %v718, %v754
    %756 = vdwg.mxu0
    %v757 = vmax.f32 %v755, 0.0
    %vm758 = vcmask 261120
    %759 = vst.msk [vmem:[%s5] sm:$0xff] %vm758, %v757
  $region29: #{fully_connected.1} parent=0 // pred_fallthru
    _
  // Predicated region
  $region30: #{fully_connected.1} parent=0 // pred_check
    _
  $region31: #{fully_connected.1} parent=0 // pred_check_branch
    %761 = sbr.rel (0) target = $region33
  $region32: #{fully_connected.1} parent=0 // pred_region
    _
  $region33: #{fully_connected.1} parent=0 // pred_fallthru
    _
  // Predicated region
  $region34: #{fully_connected.1} parent=0 // pred_check
    _
  $region35: #{fully_connected.1} parent=0 // pred_check_branch
    %763 = sbr.rel (0) target = $region37
  $region36: #{fully_connected.1} parent=0 // pred_region
    _
  $region37: #{fully_connected.1} parent=0 // pred_fallthru
    _

</llo_original>
